<compile_context>
chip_gen: v6e
topology: v6e:2x2x1
jax: 0.10.0
libtpu: 0.0.40
codegen_flags: <defaults>
</compile_context>

<pallas_src>
import functools

import jax
import jax.numpy as jnp
from jax.experimental import pallas as pl
from jax.experimental.pallas import tpu as pltpu


def convexnet_kernel(x_ref, w_ref, b_ref, o_ref, *, chunk, n_chunks):
    # Resident line parameters, already normalized by the wrapper.
    wa = w_ref[:, 0:1]          # (W, 1)  a / |line|
    wb = w_ref[:, 1:2]          # (W, 1)  b / |line|
    bc = b_ref[...]             # (W, 1)  c / |line|

    def body(c, carry):
        start = pl.multiple_of(c * chunk, chunk)
        xa = x_ref[0:1, pl.ds(start, chunk)]                  # (1, chunk)
        xb = x_ref[1:2, pl.ds(start, chunk)]                  # (1, chunk)
        # (W,1)*(1,chunk) broadcast-FMAs -> signed distances, (W, chunk).
        real_dis = wa * xa + wb * xb + bc
        # Max over the line axis: sublane reduce (XLU slot, free-ish).
        max_dis = jnp.max(real_dis, axis=0, keepdims=True)    # (1, chunk)
        # sigmoid(100*x) spelled so both exp and the reciprocal hit the EUP.
        o_ref[0:1, pl.ds(start, chunk)] = pl.reciprocal(
            1.0 + jnp.exp(-100.0 * max_dis), approx=True)
        return carry

    jax.lax.fori_loop(0, n_chunks, body, 0, unroll=True)


def convexnet_forward(x, weight, bias, *, tn=None, chunk=512):
    """ConvexNet forward.  x: (N, 2), weight: (2, W), bias: (W,) -> (N,)."""
    n = x.shape[0]
    width = weight.shape[1]

    # --- One-time O(W) normalization, folded into weight/bias (hoisted out of
    # the kernel).  A zero-length line gives inf/nan, matching the reference.
    w32 = weight.astype(jnp.float32)
    b32 = bias.astype(jnp.float32)
    inv_len = jax.lax.rsqrt(jnp.sum(w32 * w32, axis=0, keepdims=True))  # (1, W)
    w_t = (w32 * inv_len).T                                  # (W, 2)
    b2d = (b32 * inv_len[0]).reshape(width, 1)               # (W, 1)

    # --- Tile-size selection (everything forced to lane-friendly multiples).
    chunk = max(128, (int(chunk) + 127) // 128 * 128)        # inner lane chunk
    if tn is None:
        # Few large grid steps: amortize per-step overhead, but keep >=2 steps
        # so both v7x TensorCores are used for realistic N.
        tn = min(max(pl.cdiv(n, 4), 512), 16384)
    tn = max(chunk, (int(tn) + chunk - 1) // chunk * chunk)  # multiple of chunk
    n_chunks = tn // chunk

    n_pad = pl.cdiv(n, tn) * tn
    grid = (n_pad // tn,)

    # --- Layout plumbing: single fused transpose+pad pass (no zero-init+set).
    x2n = jnp.pad(x.astype(jnp.float32).T, ((0, 0), (0, n_pad - n)))  # (2, n_pad)

    kernel = functools.partial(convexnet_kernel, chunk=chunk, n_chunks=n_chunks)
    out = pl.pallas_call(
        kernel,
        out_shape=jax.ShapeDtypeStruct((1, n_pad), jnp.float32),
        grid=grid,
        in_specs=[
            pl.BlockSpec((2, tn), lambda i: (0, i)),         # x tile streams over N
            pl.BlockSpec((width, 2), lambda i: (0, 0)),      # normalized weight, resident
            pl.BlockSpec((width, 1), lambda i: (0, 0)),      # normalized bias, resident
        ],
        out_specs=pl.BlockSpec((1, tn), lambda i: (0, i)),   # lane-dense output row
        compiler_params=pltpu.CompilerParams(
            dimension_semantics=("parallel",)),
        cost_estimate=pl.CostEstimate(
            flops=5 * n_pad * width,                         # 2 mul + 2 add + max per (n, w)
            transcendentals=2 * n_pad,                       # exp + recip per point
            bytes_accessed=4 * (2 * n_pad + 3 * width + n_pad)),
    )(x2n, w_t, b2d)
    return out[0, :n]


def reference_forward(x, weight, bias):
    length = jnp.sqrt(jnp.sum(weight * weight, axis=0))
    approx_dis = bias + x @ weight
    real_dis = approx_dis / length
    max_dis = jnp.max(real_dis, axis=1)
    return jax.nn.sigmoid(max_dis * 100.0)


if __name__ == "__main__":
    key = jax.random.PRNGKey(0)
    k_x, k_w, k_b = jax.random.split(key, 3)

    N = 777      # non-multiple of the tile: exercises padding + final slice
    WIDTH = 32   # number of lines (module's `width`)
    TN = 256     # small test tile -> 4 grid steps (>=2 keeps v7x dual-TC busy)
    CHUNK = 128  # 2 inner lane-chunks per grid step (exercises the inner loop)

    x = jax.random.normal(k_x, (N, 2), dtype=jnp.float32)
    weight = jax.random.normal(k_w, (2, WIDTH), dtype=jnp.float32)
    bias = jax.random.normal(k_b, (WIDTH,), dtype=jnp.float32)

    out = convexnet_forward(x, weight, bias, tn=TN, chunk=CHUNK)
    jax.block_until_ready(out)

    ref = reference_forward(x, weight, bias)
    assert out.shape == (N,)
    assert jnp.allclose(out, ref, atol=1e-3, rtol=1e-3), (out, ref)

    print("KERNEL_OK")
</pallas_src>

<mosaic_0001>
module attributes {stable_mosaic.version = 11 : i64} {
  func.func @convexnet_kernel(%arg0: i32, %arg1: memref<2x256xf32, #tpu.memory_space<vmem>>, %arg2: memref<32x2xf32, #tpu.memory_space<vmem>>, %arg3: memref<32x1xf32, #tpu.memory_space<vmem>>, %arg4: memref<1x256xf32, #tpu.memory_space<vmem>>) attributes {dimension_semantics = [#tpu.dimension_semantics<parallel>], iteration_bounds = array<i64: 4>, scalar_prefetch = 0 : i64, scratch_operands = 0 : i64, tpu.core_type = #tpu.core_type<tc>, window_params = [{transform_indices = @transform_0, window_bounds = array<i64: 2, 256>}, {pipeline_mode = #tpu.pipeline_mode<synchronous>, transform_indices = @transform_1, window_bounds = array<i64: 32, 2>}, {pipeline_mode = #tpu.pipeline_mode<synchronous>, transform_indices = @transform_2, window_bounds = array<i64: 32, 1>}, {transform_indices = @transform_3, window_bounds = array<i64: 1, 256>}]} {
    %c0 = arith.constant 0 : index
    %c0_0 = arith.constant 0 : index
    %0 = vector.load %arg2[%c0, %c0_0] : memref<32x2xf32, #tpu.memory_space<vmem>>, vector<32x1xf32>
    %c0_1 = arith.constant 0 : index
    %c1 = arith.constant 1 : index
    %1 = vector.load %arg2[%c0_1, %c1] : memref<32x2xf32, #tpu.memory_space<vmem>>, vector<32x1xf32>
    %c0_2 = arith.constant 0 : index
    %c0_3 = arith.constant 0 : index
    %2 = vector.load %arg3[%c0_2, %c0_3] : memref<32x1xf32, #tpu.memory_space<vmem>>, vector<32x1xf32>
    %c0_i32 = arith.constant 0 : i32
    %c128_i32 = arith.constant 128 : i32
    %3 = arith.muli %c0_i32, %c128_i32 : i32
    %4 = tpu.assume_multiple %3, 128 : i32
    %c0_4 = arith.constant 0 : index
    %5 = arith.index_cast %4 : i32 to index
    %6 = vector.load %arg1[%c0_4, %5] : memref<2x256xf32, #tpu.memory_space<vmem>>, vector<1x128xf32>
    %c1_5 = arith.constant 1 : index
    %7 = arith.index_cast %4 : i32 to index
    %8 = vector.load %arg1[%c1_5, %7] : memref<2x256xf32, #tpu.memory_space<vmem>>, vector<1x128xf32>
    %9 = vector.broadcast %0 : vector<32x1xf32> to vector<32x128xf32>
    %10 = vector.broadcast %6 : vector<1x128xf32> to vector<32x128xf32>
    %11 = arith.mulf %9, %10 : vector<32x128xf32>
    %12 = vector.broadcast %1 : vector<32x1xf32> to vector<32x128xf32>
    %13 = vector.broadcast %8 : vector<1x128xf32> to vector<32x128xf32>
    %14 = arith.mulf %12, %13 : vector<32x128xf32>
    %15 = arith.addf %11, %14 : vector<32x128xf32>
    %16 = vector.broadcast %2 : vector<32x1xf32> to vector<32x128xf32>
    %17 = arith.addf %15, %16 : vector<32x128xf32>
    %cst = arith.constant dense<0xFF800000> : vector<128xf32>
    %18 = vector.multi_reduction <maximumf>, %17, %cst [0] : vector<32x128xf32> to vector<128xf32>
    %19 = vector.shape_cast %18 : vector<128xf32> to vector<1x128xf32>
    %cst_6 = arith.constant -1.000000e+02 : f32
    %20 = vector.broadcast %cst_6 : f32 to vector<1x128xf32>
    %21 = arith.mulf %20, %19 : vector<1x128xf32>
    %22 = math.exp %21 : vector<1x128xf32>
    %cst_7 = arith.constant 1.000000e+00 : f32
    %23 = vector.broadcast %cst_7 : f32 to vector<1x128xf32>
    %24 = arith.addf %23, %22 : vector<1x128xf32>
    %25 = tpu.reciprocal %24 {approx = true} : vector<1x128xf32> -> vector<1x128xf32>
    %c0_8 = arith.constant 0 : index
    %26 = arith.index_cast %4 : i32 to index
    %27 = vector.load %arg4[%c0_8, %26] : memref<1x256xf32, #tpu.memory_space<vmem>>, vector<1x128xf32>
    tpu.vector_store %arg4[%c0_8, %26], %25 {strides = array<i32>} : memref<1x256xf32, #tpu.memory_space<vmem>>, vector<1x128xf32>,
    %c1_i32 = arith.constant 1 : i32
    %c128_i32_9 = arith.constant 128 : i32
    %28 = arith.muli %c1_i32, %c128_i32_9 : i32
    %29 = tpu.assume_multiple %28, 128 : i32
    %c0_10 = arith.constant 0 : index
    %30 = arith.index_cast %29 : i32 to index
    %31 = vector.load %arg1[%c0_10, %30] : memref<2x256xf32, #tpu.memory_space<vmem>>, vector<1x128xf32>
    %c1_11 = arith.constant 1 : index
    %32 = arith.index_cast %29 : i32 to index
    %33 = vector.load %arg1[%c1_11, %32] : memref<2x256xf32, #tpu.memory_space<vmem>>, vector<1x128xf32>
    %34 = vector.broadcast %0 : vector<32x1xf32> to vector<32x128xf32>
    %35 = vector.broadcast %31 : vector<1x128xf32> to vector<32x128xf32>
    %36 = arith.mulf %34, %35 : vector<32x128xf32>
    %37 = vector.broadcast %1 : vector<32x1xf32> to vector<32x128xf32>
    %38 = vector.broadcast %33 : vector<1x128xf32> to vector<32x128xf32>
    %39 = arith.mulf %37, %38 : vector<32x128xf32>
    %40 = arith.addf %36, %39 : vector<32x128xf32>
    %41 = vector.broadcast %2 : vector<32x1xf32> to vector<32x128xf32>
    %42 = arith.addf %40, %41 : vector<32x128xf32>
    %cst_12 = arith.constant dense<0xFF800000> : vector<128xf32>
    %43 = vector.multi_reduction <maximumf>, %42, %cst_12 [0] : vector<32x128xf32> to vector<128xf32>
    %44 = vector.shape_cast %43 : vector<128xf32> to vector<1x128xf32>
    %cst_13 = arith.constant -1.000000e+02 : f32
    %45 = vector.broadcast %cst_13 : f32 to vector<1x128xf32>
    %46 = arith.mulf %45, %44 : vector<1x128xf32>
    %47 = math.exp %46 : vector<1x128xf32>
    %cst_14 = arith.constant 1.000000e+00 : f32
    %48 = vector.broadcast %cst_14 : f32 to vector<1x128xf32>
    %49 = arith.addf %48, %47 : vector<1x128xf32>
    %50 = tpu.reciprocal %49 {approx = true} : vector<1x128xf32> -> vector<1x128xf32>
    %c0_15 = arith.constant 0 : index
    %51 = arith.index_cast %29 : i32 to index
    %52 = vector.load %arg4[%c0_15, %51] : memref<1x256xf32, #tpu.memory_space<vmem>>, vector<1x128xf32>
    tpu.vector_store %arg4[%c0_15, %51], %50 {strides = array<i32>} : memref<1x256xf32, #tpu.memory_space<vmem>>, vector<1x128xf32>,
    %c2_i32 = arith.constant 2 : i32
    return
  }
  func.func @transform_0(%arg0: i32) -> (i32, i32) {
    %c0_i32 = arith.constant 0 : i32
    %c0_i32_0 = arith.constant 0 : i32
    return %c0_i32, %arg0 : i32, i32
  }
  func.func @transform_1(%arg0: i32) -> (i32, i32) {
    %c0_i32 = arith.constant 0 : i32
    %c0_i32_0 = arith.constant 0 : i32
    %c0_i32_1 = arith.constant 0 : i32
    return %c0_i32, %c0_i32_0 : i32, i32
  }
  func.func @transform_2(%arg0: i32) -> (i32, i32) {
    %c0_i32 = arith.constant 0 : i32
    %c0_i32_0 = arith.constant 0 : i32
    %c0_i32_1 = arith.constant 0 : i32
    return %c0_i32, %c0_i32_0 : i32, i32
  }
  func.func @transform_3(%arg0: i32) -> (i32, i32) {
    %c0_i32 = arith.constant 0 : i32
    %c0_i32_0 = arith.constant 0 : i32
    return %c0_i32, %arg0 : i32, i32
  }
}

</mosaic_0001>

<llo_original>
// kernel: tpu_custom_call.1
$region0: #{tpu_custom_call.1}
  #allocation0 [shape = 'u32[]', space=smem, size = 0x4, offset = 0x4, fixed_abs, tag = 'smem constant byte address 0x4 - core index']
  #allocation1 [shape = 'u32[144,128]{1,0:T(1,128)}', space=vmem, size = 0x12000, scoped, tag = 'internal scratch']
  %s0 = inlined_call_operand.vmem [shape: f32[2,1024], index: 0, kind: input, shape index: {}]
  %s1 = inlined_call_operand.vmem [shape: f32[32,2], index: 1, kind: input, shape index: {}]
  %s2 = inlined_call_operand.vmem [shape: f32[32,1], index: 2, kind: input, shape index: {}]
  %s3 = inlined_call_operand.hbm [shape: f32[1,1024], index: 3, kind: output, shape index: {}]
  %s4 = sld [smem:[#allocation0]]
  $region45: #{tpu_custom_call.1} parent=0
    _
  %s6 = ssub.s32 1, %s4
  %s7 = scalar_select 0, %s6, %s4
  $region1: #{tpu_custom_call.1} parent=0
    #allocation2 [shape = 'u8[2048]{0}', space=vmem, size = 0x800, scoped, tag = 'output window, operand 0']
    #allocation3 [shape = 's32[2]{0}', space=sflag, size = 0x8, scoped, tag = 'scoped memory for tpu_custom_call.1']
    %8 = vsyncpa [#allocation3], 0
    %s9 = scalar_lea.sflag [#allocation3], 1
    %10 = vsyncpa %s9, 0
    loop: start=0, step=1, limit=6
    $region2: #{tpu_custom_call.1} parent=1 // loop_pre_header
      _
    $region3: #{tpu_custom_call.1} parent=1 // loop_header
      %s12 = sphi 0, %s16
      %p13 = scmp.ge.s32.totalorder %s12, 6
      %s22 = sphi 0, %s24
      %s25 = sphi 0, %s22
      %s26 = sphi 0, %s25
      %s42 = sphi 0, %s26
      %s46 = sphi 0, %s46
      %s48 = sphi 0, %s46
      %s49 = sphi 0, %s48
      %s63 = sphi 0, %s49
      %s67 = sphi 0, %s67
      %s69 = sphi 0, %s67
      %s70 = sphi 0, %s69
      %s84 = sphi 0, %s70
      %s90 = sphi 0, %s92
      %s93 = sphi 0, %s90
      %s94 = sphi 0, %s93
      %s110 = sphi 0, %s94
    $region4: #{tpu_custom_call.1} parent=1 // loop_header_branch
      %15 = sbr.rel (%p13) target = $region8
    $region5: #{tpu_custom_call.1} parent=1 // loop_body
      %s17 = ssub.s32 %s12, 1
      %s18 = ssub.s32 %s12, 2
      %s19 = sadd.s32 %s12, 1
      %s20 = ssub.s32 %s12, %s19
      %p21 = scmp.eq.s32.totalorder %s20, 0
      %s23 = sadd.s32 %s22, 1
      %s24 = scalar_select %p21, %s22, %s23
      %p27 = pneg %p21
      %p28 = scmp.eq.s32.totalorder %s12, 3
      %p29 = por %p27, %p28
      %p30 = scmp.ne.s32.totalorder %s22, %s25
      %p31 = scmp.eq.s32.totalorder %s12, 0
      %p32 = por %p30, %p31
      %p33 = scmp.ne.s32.totalorder %s22, %s25
      %p34 = scmp.eq.s32.totalorder %s17, 3
      %p35 = por %p33, %p34
      %p36 = scmp.ne.s32.totalorder %s25, %s26
      %p37 = scmp.eq.s32.totalorder %s17, 0
      %p38 = por %p36, %p37
      %p39 = scmp.ne.s32.totalorder %s25, %s26
      %p40 = scmp.eq.s32.totalorder %s18, 3
      %p41 = por %p39, %p40
      %p43 = scmp.ne.s32.totalorder %s26, %s42
      %p44 = scmp.eq.s32.totalorder %s18, 0
      %p45 = por %p43, %p44
      %s47 = sadd.s32 %s46, 1
      %p50 = scmp.eq.s32.totalorder %s12, 3
      %p51 = scmp.ne.s32.totalorder %s46, %s48
      %p52 = scmp.eq.s32.totalorder %s12, 0
      %p53 = por %p51, %p52
      %p54 = scmp.ne.s32.totalorder %s46, %s48
      %p55 = scmp.eq.s32.totalorder %s17, 3
      %p56 = por %p54, %p55
      %p57 = scmp.ne.s32.totalorder %s48, %s49
      %p58 = scmp.eq.s32.totalorder %s17, 0
      %p59 = por %p57, %p58
      %p60 = scmp.ne.s32.totalorder %s48, %s49
      %p61 = scmp.eq.s32.totalorder %s18, 3
      %p62 = por %p60, %p61
      %p64 = scmp.ne.s32.totalorder %s49, %s63
      %p65 = scmp.eq.s32.totalorder %s18, 0
      %p66 = por %p64, %p65
      %s68 = sadd.s32 %s67, 1
      %p71 = scmp.eq.s32.totalorder %s12, 3
      %p72 = scmp.ne.s32.totalorder %s67, %s69
      %p73 = scmp.eq.s32.totalorder %s12, 0
      %p74 = por %p72, %p73
      %p75 = scmp.ne.s32.totalorder %s67, %s69
      %p76 = scmp.eq.s32.totalorder %s17, 3
      %p77 = por %p75, %p76
      %p78 = scmp.ne.s32.totalorder %s69, %s70
      %p79 = scmp.eq.s32.totalorder %s17, 0
      %p80 = por %p78, %p79
      %p81 = scmp.ne.s32.totalorder %s69, %s70
      %p82 = scmp.eq.s32.totalorder %s18, 3
      %p83 = por %p81, %p82
      %p85 = scmp.ne.s32.totalorder %s70, %s84
      %p86 = scmp.eq.s32.totalorder %s18, 0
      %p87 = por %p85, %p86
      %s88 = ssub.s32 %s12, %s19
      %p89 = scmp.eq.s32.totalorder %s88, 0
      %s91 = sadd.s32 %s90, 1
      %s92 = scalar_select %p89, %s90, %s91
      %p95 = pneg %p89
      %p96 = scmp.eq.s32.totalorder %s12, 3
      %p97 = por %p95, %p96
      %p98 = scmp.ne.s32.totalorder %s90, %s93
      %p99 = scmp.eq.s32.totalorder %s12, 0
      %p100 = por %p98, %p99
      %p101 = scmp.ne.s32.totalorder %s90, %s93
      %p102 = scmp.eq.s32.totalorder %s17, 3
      %p103 = por %p101, %p102
      %p104 = scmp.ne.s32.totalorder %s93, %s94
      %p105 = scmp.eq.s32.totalorder %s17, 0
      %p106 = por %p104, %p105
      %p107 = scmp.ne.s32.totalorder %s93, %s94
      %p108 = scmp.eq.s32.totalorder %s18, 3
      %p109 = por %p107, %p108
      %p111 = scmp.ne.s32.totalorder %s94, %s110
      %p112 = scmp.eq.s32.totalorder %s18, 0
      %p113 = por %p111, %p112
      %p114 = scmp.le.s32.totalorder 1, %s12
      %p115 = scmp.lt.s32.totalorder %s12, 5
      %p116 = pnand %p114, %p115
      %p117 = pneg %p116
      // Predicated region
      $region9: #{tpu_custom_call.1} parent=5 // pred_check
        _
      $region10: #{tpu_custom_call.1} parent=5 // pred_check_branch
        %119 = sbr.rel (%p116) target = $region12
      $region11: #{tpu_custom_call.1} parent=5 // pred_region
        %s120 = ssub.s32 %s12, 1
        // Predicated region
        $region13: #{tpu_custom_call.1} parent=11 // pred_check
          %p121 = pneg %p59
        $region14: #{tpu_custom_call.1} parent=11 // pred_check_branch
          %123 = sbr.rel (%p121) target = $region16
        $region15: #{tpu_custom_call.1} parent=11 // pred_region
          _
        $region16: #{tpu_custom_call.1} parent=11 // pred_fallthru
          _
        // Predicated region
        $region17: #{tpu_custom_call.1} parent=11 // pred_check
          %p124 = pneg %p80
        $region18: #{tpu_custom_call.1} parent=11 // pred_check_branch
          %126 = sbr.rel (%p124) target = $region20
        $region19: #{tpu_custom_call.1} parent=11 // pred_region
          _
        $region20: #{tpu_custom_call.1} parent=11 // pred_fallthru
          _
      $region12: #{tpu_custom_call.1} parent=5 // pred_fallthru
        _
      %p127 = scmp.lt.s32.totalorder %s12, 4
      // Predicated region
      $region21: #{tpu_custom_call.1} parent=5 // pred_check
        %p128 = pneg %p127
      $region22: #{tpu_custom_call.1} parent=5 // pred_check_branch
        %130 = sbr.rel (%p128) target = $region24
      $region23: #{tpu_custom_call.1} parent=5 // pred_region
        // Predicated region
        $region25: #{tpu_custom_call.1} parent=23 // pred_check
          %p131 = pneg %p32
        $region26: #{tpu_custom_call.1} parent=23 // pred_check_branch
          %133 = sbr.rel (%p131) target = $region28
        $region27: #{tpu_custom_call.1} parent=23 // pred_region
          %s134 = smul.u32 2, %s12
          %p135 = scmp.lt.s32.totalorder %s134, 7
          %s136 = scalar_select %p135, %s134, 7
          %s137 = smul.addr %s136, 2
          %s138 = scalar_lea.vmem %s0, %s137
          %s139 = smul.u32 2, %s12
        $region28: #{tpu_custom_call.1} parent=23 // pred_fallthru
          _
      $region24: #{tpu_custom_call.1} parent=5 // pred_fallthru
        _
      %p140 = scmp.le.s32.totalorder 1, %s12
      %p141 = scmp.lt.s32.totalorder %s12, 5
      %p142 = pnand %p140, %p141
      %p143 = pneg %p142
      // Predicated region
      $region29: #{tpu_custom_call.1} parent=5 // pred_check
        _
      $region30: #{tpu_custom_call.1} parent=5 // pred_check_branch
        %145 = sbr.rel (%p142) target = $region32
      $region31: #{tpu_custom_call.1} parent=5 // pred_region
        %s146 = ssub.s32 %s12, 1
        %s147 = smul.u32 2, %s17
        %p148 = scmp.lt.s32.totalorder %s147, 7
        %s149 = scalar_select %p148, %s147, 7
        %s150 = smul.addr %s149, 2
        %s151 = scalar_lea.vmem %s0, %s150
        %p152 = pneg %p38
        %p153 = pneg %p35
        %p154 = pneg %p59
        %p155 = pneg %p56
        %p156 = pneg %p80
        %p157 = pneg %p77
        %p158 = pneg %p106
        %p159 = pneg %p103
        %s160 = sand.u32 %s93, 1
        %s161 = scalar_lea.sflag [#allocation3], %s160
        %s162 = sand.u32 %s93, 1
        %s163 = smul.addr %s162, 2
        %s164 = scalar_lea.vmem [#allocation2], %s163
        %s165 = smul.u32 2, %s17
        %p166 = scmp.lt.s32.totalorder %s165, 7
        %s167 = scalar_select %p166, %s165, 7
        %s168 = smul.addr %s167, 2
        %s169 = scalar_lea.vmem %s0, %s168
        %s170 = smul.u32 2, %s17
        %s171 = smul.u32 2, %s17
        %v172 = vld [vmem:[%s1] sm:$0xff]
        %v173 = vld [vmem:[%s1 + $0x8] sm:$0xff]
        %v174 = vld [vmem:[%s1 + $0x10] sm:$0xff]
        %v175 = vld [vmem:[%s1 + $0x18] sm:$0xff]
        %v176 = vld [vmem:[%s2] sm:$0xff]
        %v177 = vld [vmem:[%s2 + $0x8] sm:$0xff]
        %v178 = vld [vmem:[%s2 + $0x10] sm:$0xff]
        %v179 = vld [vmem:[%s2 + $0x18] sm:$0xff]
        %v180 = vld [vmem:[%s169] sm:$0x1]
        %v181 = vld [vmem:[%s169 + $0x1] sm:$0x1]
        %183 = vset.pattern.permute.xlu0 0
        %184 = vperm.xlu0 %183, %v172
        %v185 = vpop.permute.xlu0 %184
        %188 = vset.pattern.permute.xlu0 0
        %189 = vperm.xlu0 %188, %v173
        %v190 = vpop.permute.xlu0 %189
        %193 = vset.pattern.permute.xlu0 0
        %194 = vperm.xlu0 %193, %v174
        %v195 = vpop.permute.xlu0 %194
        %198 = vset.pattern.permute.xlu0 0
        %199 = vperm.xlu0 %198, %v175
        %v200 = vpop.permute.xlu0 %199
        %v202 = vlaneseq
        %v203 = vshrl.u32 %v202, 7
        %v204 = vsub.s32 0, %v203
        %v205 = vrot.slane %v180, %v204
        %v206 = vmul.f32 %v185, %v205
        %v207 = vmul.f32 %v190, %v205
        %v208 = vmul.f32 %v195, %v205
        %v209 = vmul.f32 %v200, %v205
        %210 = vset.pattern.permute.xlu0 1
        %211 = vperm.xlu0 %210, %v172
        %v212 = vpop.permute.xlu0 %211
        %214 = vset.pattern.permute.xlu0 1
        %215 = vperm.xlu0 %214, %v173
        %v216 = vpop.permute.xlu0 %215
        %218 = vset.pattern.permute.xlu0 1
        %219 = vperm.xlu0 %218, %v174
        %v220 = vpop.permute.xlu0 %219
        %222 = vset.pattern.permute.xlu0 1
        %223 = vperm.xlu0 %222, %v175
        %v224 = vpop.permute.xlu0 %223
        %v226 = vlaneseq
        %v227 = vshrl.u32 %v226, 7
        %v228 = vsub.s32 0, %v227
        %v229 = vrot.slane %v181, %v228
        %v230 = vmul.f32 %v212, %v229
        %v231 = vmul.f32 %v216, %v229
        %v232 = vmul.f32 %v220, %v229
        %v233 = vmul.f32 %v224, %v229
        %v234 = vadd.f32 %v206, %v230
        %v235 = vadd.f32 %v207, %v231
        %v236 = vadd.f32 %v208, %v232
        %v237 = vadd.f32 %v209, %v233
        %239 = vset.pattern.permute.xlu0 0
        %240 = vperm.xlu0 %239, %v176
        %v241 = vpop.permute.xlu0 %240
        %244 = vset.pattern.permute.xlu0 0
        %245 = vperm.xlu0 %244, %v177
        %v246 = vpop.permute.xlu0 %245
        %249 = vset.pattern.permute.xlu0 0
        %250 = vperm.xlu0 %249, %v178
        %v251 = vpop.permute.xlu0 %250
        %254 = vset.pattern.permute.xlu0 0
        %255 = vperm.xlu0 %254, %v179
        %v256 = vpop.permute.xlu0 %255
        %v258 = vadd.f32 %v234, %v241
        %v259 = vadd.f32 %v235, %v246
        %v260 = vadd.f32 %v236, %v251
        %v261 = vadd.f32 %v237, %v256
        %v262 = vmax.f32 %v258, %v259
        %v263 = vmax.f32 %v260, %v261
        %v264 = vmax.f32 %v262, %v263
        %v265 = vrot.slane %v264, 4
        %v266 = vmax.f32 %v264, %v265
        %v267 = vrot.slane %v266, 2
        %v268 = vmax.f32 %v266, %v267
        %v269 = vrot.slane %v268, 1
        %v270 = vmax.f32 %v268, %v269
        %v271 = vmul.f32 %v270, -100.0
        %v272 = vmul.f32 %v271, 1.442695
        %v273 = vpow.pop %v272
        %v274 = vadd.f32 %v273, 1.0
        %v275 = vrcp.pop %v274
        %v276 = vlaneseq
        %vm277 = vcmp.ge.s32.totalorder %v276, 0
        %vm278 = vcmp.lt.s32.totalorder %v276, 128
        %vm279 = vmand %vm277, %vm278
        %280 = vst.msk [vmem:[%s164] sm:$0x1] %vm279, %v275
        %s281 = scalar_lea.vmem %s169, 2
        %v282 = vld [vmem:[%s281] sm:$0x1]
        %v283 = vld [vmem:[%s281 + $0x1] sm:$0x1]
        %v284 = vlaneseq
        %v285 = vshrl.u32 %v284, 7
        %v286 = vsub.s32 0, %v285
        %v287 = vrot.slane %v282, %v286
        %v288 = vmul.f32 %v185, %v287
        %v289 = vmul.f32 %v190, %v287
        %v290 = vmul.f32 %v195, %v287
        %v291 = vmul.f32 %v200, %v287
        %v292 = vlaneseq
        %v293 = vshrl.u32 %v292, 7
        %v294 = vsub.s32 0, %v293
        %v295 = vrot.slane %v283, %v294
        %v296 = vmul.f32 %v212, %v295
        %v297 = vmul.f32 %v216, %v295
        %v298 = vmul.f32 %v220, %v295
        %v299 = vmul.f32 %v224, %v295
        %v300 = vadd.f32 %v288, %v296
        %v301 = vadd.f32 %v289, %v297
        %v302 = vadd.f32 %v290, %v298
        %v303 = vadd.f32 %v291, %v299
        %v304 = vadd.f32 %v300, %v241
        %v305 = vadd.f32 %v301, %v246
        %v306 = vadd.f32 %v302, %v251
        %v307 = vadd.f32 %v303, %v256
        %v308 = vmax.f32 %v304, %v305
        %v309 = vmax.f32 %v306, %v307
        %v310 = vmax.f32 %v308, %v309
        %v311 = vrot.slane %v310, 4
        %v312 = vmax.f32 %v310, %v311
        %v313 = vrot.slane %v312, 2
        %v314 = vmax.f32 %v312, %v313
        %v315 = vrot.slane %v314, 1
        %v316 = vmax.f32 %v314, %v315
        %v317 = vmul.f32 %v316, -100.0
        %v318 = vmul.f32 %v317, 1.442695
        %v319 = vpow.pop %v318
        %v320 = vadd.f32 %v319, 1.0
        %v321 = vrcp.pop %v320
        %s322 = scalar_lea.vmem %s164, 1 [#allocation2]
        %323 = vst.msk [vmem:[%s322] sm:$0x1] %vm279, %v321
        %s324 = sand.u32 %s93, 1
        %s325 = scalar_lea.sflag [#allocation3], %s324
        %s326 = sand.u32 %s93, 1
        %s327 = smul.addr %s326, 2
        %s328 = scalar_lea.vmem [#allocation2], %s327
        // Predicated region
        $region33: #{tpu_custom_call.1} parent=31 // pred_check
          %p329 = pneg %p103
        $region34: #{tpu_custom_call.1} parent=31 // pred_check_branch
          %331 = sbr.rel (%p329) target = $region36
        $region35: #{tpu_custom_call.1} parent=31 // pred_region
          %s332 = smul.u32 2, %s17
          %s334 = ssub.s32 32, 32
          %335 = vsyncadd %s325, %s334
          %s336 = smul.addr %s332, 16
          %s337 = scalar_lea.hbm %s3, %s336
          %s339 = sshll.u32 %s328, 4
          %s340 = int_to_ptr.vmem [resolvable:$true] %s339
          %342 = dma.vmem_to_hbm [thread:$0]  %s340, 32, %s337, %s325
        $region36: #{tpu_custom_call.1} parent=31 // pred_fallthru
          _
      $region32: #{tpu_custom_call.1} parent=5 // pred_fallthru
        _
      %p343 = scmp.le.s32.totalorder 2, %s12
      // Predicated region
      $region37: #{tpu_custom_call.1} parent=5 // pred_check
        %p344 = pneg %p343
      $region38: #{tpu_custom_call.1} parent=5 // pred_check_branch
        %346 = sbr.rel (%p344) target = $region40
      $region39: #{tpu_custom_call.1} parent=5 // pred_region
        %s347 = ssub.s32 %s12, 2
        // Predicated region
        $region41: #{tpu_custom_call.1} parent=39 // pred_check
          %p348 = pneg %p109
        $region42: #{tpu_custom_call.1} parent=39 // pred_check_branch
          %350 = sbr.rel (%p348) target = $region44
        $region43: #{tpu_custom_call.1} parent=39 // pred_region
          %s351 = sand.u32 %s94, 1
          %s352 = scalar_lea.sflag [#allocation3], %s351
          %s353 = sand.u32 %s94, 1
          %s354 = smul.addr %s353, 2
          %s355 = scalar_lea.vmem [#allocation2], %s354
          %356 = dma.done %s352, 32
        $region44: #{tpu_custom_call.1} parent=39 // pred_fallthru
          _
      $region40: #{tpu_custom_call.1} parent=5 // pred_fallthru
        _
    $region6: #{tpu_custom_call.1} parent=1 // loop_footer
      %s16 = sadd.s32 1, %s12
    $region7: #{tpu_custom_call.1} parent=1 // loop_footer_branch
      %11 = sbr.rel target = $region3
    $region8: #{tpu_custom_call.1} parent=1 // loop_exit
      _
    %357 = vsyncpa [#allocation3], 1
    %s358 = scalar_lea.sflag [#allocation3], 1
    %359 = vsyncpa %s358, 1

</llo_original>
